<compile_context>
chip_gen: v5e
topology: v5e:2x2
jax: 0.10.0
libtpu: 0.0.40
codegen_flags: <defaults>
</compile_context>

<pallas_src>
import jax
import jax.numpy as jnp
from jax.experimental import pallas as pl
from jax.experimental.pallas import tpu as pltpu

_LANE = 128


def _addcoords_kernel(x_ref, coords_ref, o_ref):
    # x_ref:      (bt, C,   t_hw)  flattened-spatial tile, lane-dense last dim
    # coords_ref: (1,  2,   t_hw)  precomputed xx/yy rows for this HW tile
    # o_ref:      (bt, C+2, t_hw)
    bt, C, t_hw = x_ref.shape
    o_ref[:, :C, :] = x_ref[...]
    o_ref[:, C:, :] = jnp.broadcast_to(coords_ref[...], (bt, 2, t_hw))


def _vmem_capacity_bytes():
    try:
        info = pltpu.get_tpu_info()
        cap = getattr(info, "vmem_capacity_bytes", None)
        if cap:
            return int(cap)
    except Exception:
        pass
    return 128 << 20  # v5e / v6e default


def add_coords(x, *, _force_block=None):
    """AddCoords forward. x: (B, C, H, W) -> (B, C+2, H, W)."""
    B, C, H, W = x.shape
    HW = H * W
    dtype = x.dtype
    itemsize = jnp.dtype(dtype).itemsize

    # Batch-invariant coordinate planes computed once in the wrapper (VPU work
    # is trivial; the kernel stays a pure DMA-rate copy).
    xx = jnp.arange(H, dtype=jnp.float32) * (2.0 / max(H - 1, 1)) - 1.0  # varies along H
    yy = jnp.arange(W, dtype=jnp.float32) * (2.0 / max(W - 1, 1)) - 1.0  # varies along W
    coords = jnp.stack(
        [jnp.broadcast_to(xx[:, None], (H, W)),
         jnp.broadcast_to(yy[None, :], (H, W))],
        axis=0,
    ).astype(dtype).reshape(1, 2, HW)

    # Lane-dense layout: flatten (H, W) -> H*W so stores are wide unmasked vst.
    xf = x.reshape(B, C, HW)

    vmem_cap = _vmem_capacity_bytes()
    small_vmem = vmem_cap <= (64 << 20)  # v7x-class (64 MiB / TensorCore)

    per_image_out = (C + 2) * HW * itemsize

    if _force_block is not None:
        bt, t_hw = _force_block
    else:
        # Double-buffered (in + out + coords) working-set budget and target
        # output-block size per grid step (amortizes ~0.35 us/step overhead).
        ws_budget = (36 << 20) if small_vmem else (64 << 20)
        target_out = (3 << 20) if small_vmem else (6 << 20)
        # Keep 2*(block_in + block_out) inside the budget: in ~= out*C/(C+2).
        max_out = (ws_budget // 2) * (C + 2) // (2 * C + 2)
        target_out = max(min(target_out, max_out), 128 << 10)

        if per_image_out <= target_out:
            # Whole images per step; pack several to reach the target size.
            # No B-divisibility requirement: partial batch tiles are masked.
            t_hw = HW
            bt = max(1, min(B, target_out // per_image_out))
        else:
            # Tile the flattened HW axis (multiple of 128 lanes, or full HW).
            bt = 1
            if HW <= _LANE:
                t_hw = HW
            else:
                t_hw = (target_out // ((C + 2) * itemsize)) // _LANE * _LANE
                t_hw = int(min(max(t_hw, _LANE), HW))

        # Keep >= 2 grid steps when the tensor is big enough to care
        # (2 TensorCores on v7x; also lets the DMA pipeline overlap).
        nb = -(-B // bt)
        ns = -(-HW // t_hw)
        if nb * ns < 2 and B * per_image_out >= (1 << 20):
            if B >= 2:
                bt = -(-B // 2)
            elif HW >= 2 * _LANE:
                t_hw = max(_LANE, ((HW // 2) // _LANE) * _LANE)

    nb = -(-B // bt)
    ns = -(-HW // t_hw)
    grid = (nb, ns)

    # Explicit VMEM limit: double-buffered blocks + headroom, per-gen ceiling.
    block_in = bt * C * t_hw * itemsize
    block_out = bt * (C + 2) * t_hw * itemsize
    coords_blk = 2 * t_hw * itemsize
    need = 2 * (block_in + block_out + coords_blk)
    vmem_ceiling = (40 << 20) if small_vmem else (96 << 20)
    vmem_bytes = int(min(max(need + (4 << 20), 16 << 20), vmem_ceiling))

    # Accurate mem-bound traffic: read C, write C+2, coords read once.
    bytes_accessed = (C * B + (C + 2) * B + 2) * HW * itemsize

    out = pl.pallas_call(
        _addcoords_kernel,
        out_shape=jax.ShapeDtypeStruct((B, C + 2, HW), dtype),
        grid_spec=pltpu.PrefetchScalarGridSpec(
            num_scalar_prefetch=0,
            grid=grid,
            in_specs=[
                pl.BlockSpec((bt, C, t_hw), lambda b, s: (b, 0, s)),
                pl.BlockSpec((1, 2, t_hw), lambda b, s: (0, 0, s)),
            ],
            out_specs=pl.BlockSpec((bt, C + 2, t_hw), lambda b, s: (b, 0, s)),
        ),
        compiler_params=pltpu.CompilerParams(
            dimension_semantics=("parallel", "parallel"),
            vmem_limit_bytes=vmem_bytes,
        ),
        cost_estimate=pl.CostEstimate(
            flops=0,
            transcendentals=0,
            bytes_accessed=int(bytes_accessed),
        ),
    )(xf, coords)
    return out.reshape(B, C + 2, H, W)


def add_coords_ref(x):
    """Pure-JAX reference mirroring the PyTorch AddCoords semantics."""
    B, C, H, W = x.shape
    xx = (jnp.arange(H, dtype=jnp.float32) / max(H - 1, 1) * 2.0 - 1.0)[:, None]
    yy = (jnp.arange(W, dtype=jnp.float32) / max(W - 1, 1) * 2.0 - 1.0)[None, :]
    xx = jnp.broadcast_to(xx, (B, 1, H, W)).astype(x.dtype)
    yy = jnp.broadcast_to(yy, (B, 1, H, W)).astype(x.dtype)
    return jnp.concatenate([x, xx, yy], axis=1)


if __name__ == "__main__":
    key = jax.random.PRNGKey(0)
    k0, k1 = jax.random.split(key)

    # Primary check at the module's natural small shape.
    B, C, H, W = 2, 4, 16, 16
    x = jax.random.normal(k0, (B, C, H, W), dtype=jnp.float32)
    out = jax.block_until_ready(add_coords(x))
    ref = add_coords_ref(x)
    assert out.shape == (B, C + 2, H, W), out.shape
    assert jnp.allclose(out, ref, atol=1e-6, rtol=1e-6), "mismatch vs reference"

    # Exercise the HW-tiling / partial-tile paths with forced block sizes:
    # bt=2 does not divide B=3, t_hw=128 does not divide H*W=320, C=5 is not a
    # multiple of 8 (masked sublane stores).
    x2 = jax.random.normal(k1, (3, 5, 16, 20), dtype=jnp.float32)
    out2 = jax.block_until_ready(add_coords(x2, _force_block=(2, 128)))
    assert jnp.allclose(out2, add_coords_ref(x2), atol=1e-6, rtol=1e-6), "tiled mismatch"

    print("KERNEL_OK")
</pallas_src>

<mosaic_0001>
module attributes {stable_mosaic.version = 11 : i64} {
  func.func @_addcoords_kernel(%arg0: i32, %arg1: i32, %arg2: memref<2x4x256xf32, #tpu.memory_space<vmem>>, %arg3: memref<1x2x256xf32, #tpu.memory_space<vmem>>, %arg4: memref<2x6x256xf32, #tpu.memory_space<vmem>>) attributes {dimension_semantics = [#tpu.dimension_semantics<parallel>, #tpu.dimension_semantics<parallel>], iteration_bounds = array<i64: 1, 1>, scalar_prefetch = 0 : i64, scratch_operands = 0 : i64, tpu.core_type = #tpu.core_type<tc>, window_params = [{transform_indices = @transform_0, window_bounds = array<i64: 2, 4, 256>}, {transform_indices = @transform_1, window_bounds = array<i64: 1, 2, 256>}, {transform_indices = @transform_2, window_bounds = array<i64: 2, 6, 256>}]} {
    %c0 = arith.constant 0 : index
    %c0_0 = arith.constant 0 : index
    %c0_1 = arith.constant 0 : index
    %0 = vector.load %arg2[%c0, %c0_0, %c0_1] : memref<2x4x256xf32, #tpu.memory_space<vmem>>, vector<2x4x256xf32>
    %c0_2 = arith.constant 0 : index
    %c0_3 = arith.constant 0 : index
    %c0_4 = arith.constant 0 : index
    %1 = vector.load %arg4[%c0_2, %c0_3, %c0_4] : memref<2x6x256xf32, #tpu.memory_space<vmem>>, vector<2x4x256xf32>
    tpu.vector_store %arg4[%c0_2, %c0_3, %c0_4], %0 {strides = array<i32>} : memref<2x6x256xf32, #tpu.memory_space<vmem>>, vector<2x4x256xf32>,
    %c0_5 = arith.constant 0 : index
    %c0_6 = arith.constant 0 : index
    %c0_7 = arith.constant 0 : index
    %2 = vector.load %arg3[%c0_5, %c0_6, %c0_7] : memref<1x2x256xf32, #tpu.memory_space<vmem>>, vector<1x2x256xf32>
    %3 = vector.shape_cast %2 : vector<1x2x256xf32> to vector<1x2x256xf32>
    %4 = vector.broadcast %3 : vector<1x2x256xf32> to vector<2x2x256xf32>
    %c0_8 = arith.constant 0 : index
    %c4 = arith.constant 4 : index
    %c0_9 = arith.constant 0 : index
    %5 = vector.load %arg4[%c0_8, %c4, %c0_9] : memref<2x6x256xf32, #tpu.memory_space<vmem>>, vector<2x2x256xf32>
    tpu.vector_store %arg4[%c0_8, %c4, %c0_9], %4 {strides = array<i32>} : memref<2x6x256xf32, #tpu.memory_space<vmem>>, vector<2x2x256xf32>,
    return
  }
  func.func @transform_0(%arg0: i32, %arg1: i32) -> (i32, i32, i32) {
    %c0_i32 = arith.constant 0 : i32
    %c0_i32_0 = arith.constant 0 : i32
    return %arg0, %c0_i32, %arg1 : i32, i32, i32
  }
  func.func @transform_1(%arg0: i32, %arg1: i32) -> (i32, i32, i32) {
    %c0_i32 = arith.constant 0 : i32
    %c0_i32_0 = arith.constant 0 : i32
    %c0_i32_1 = arith.constant 0 : i32
    return %c0_i32, %c0_i32_0, %arg1 : i32, i32, i32
  }
  func.func @transform_2(%arg0: i32, %arg1: i32) -> (i32, i32, i32) {
    %c0_i32 = arith.constant 0 : i32
    %c0_i32_0 = arith.constant 0 : i32
    return %arg0, %c0_i32, %arg1 : i32, i32, i32
  }
}

</mosaic_0001>

<llo_original>
// kernel: tpu_custom_call.1
$region0: #{tpu_custom_call.1}
  #allocation0 [shape = 'u32[]', space=smem, size = 0x4, offset = 0x4, fixed_abs, tag = 'smem constant byte address 0x4 - core index']
  #allocation1 [shape = 'u32[72,128]{1,0:T(1,128)}', space=vmem, size = 0x9000, scoped, tag = 'internal scratch']
  %s0 = inlined_call_operand.hbm [shape: f32[2,4,256], index: 0, kind: input, shape index: {}]
  %s1 = inlined_call_operand.hbm [shape: f32[1,2,256], index: 1, kind: input, shape index: {}]
  %s2 = inlined_call_operand.vmem [shape: f32[2,6,256], index: 2, kind: output, shape index: {}]
  %s3 = sld [smem:[#allocation0]]
  $region26: #{tpu_custom_call.1} parent=0
    _
  %s5 = ssub.s32 1, %s3
  %s6 = scalar_select 0, %s5, %s3
  $region1: #{tpu_custom_call.1} parent=0
    #allocation2 [shape = 'u8[8192]{0}', space=vmem, size = 0x2000, scoped, tag = 'input window, operand 0, single buffered']
    #allocation3 [shape = 's32[1]{0}', space=sflag, size = 0x4, scoped, tag = 'scoped memory for tpu_custom_call.1']
    #allocation4 [shape = 'u8[2048]{0}', space=vmem, size = 0x800, scoped, tag = 'input window, operand 1, single buffered']
    #allocation5 [shape = 's32[1]{0}', space=sflag, size = 0x4, scoped, tag = 'scoped memory for tpu_custom_call.1']
    %7 = vsyncpa [#allocation3], 0
    %8 = vsyncpa [#allocation5], 0
    // Predicated region
    $region2: #{tpu_custom_call.1} parent=1 // pred_check
      _
    $region3: #{tpu_custom_call.1} parent=1 // pred_check_branch
      %10 = sbr.rel (0) target = $region5
    $region4: #{tpu_custom_call.1} parent=1 // pred_region
      %12 = vsyncadd [#allocation3], 0
      %s13 = sshll.u32 %s0, 4
      %s14 = int_to_ptr.hbm [resolvable:$true] %s13
      %s15 = sshll.u32 [#allocation2], 4
      %s16 = int_to_ptr.vmem [resolvable:$true] %s15
      %21 = dma.hbm_to_vmem [thread:$0]  %s14, 256, %s16, [#allocation3], 128, 128, 8
    $region5: #{tpu_custom_call.1} parent=1 // pred_fallthru
      _
    // Predicated region
    $region6: #{tpu_custom_call.1} parent=1 // pred_check
      _
    $region7: #{tpu_custom_call.1} parent=1 // pred_check_branch
      %23 = sbr.rel (0) target = $region9
    $region8: #{tpu_custom_call.1} parent=1 // pred_region
      %25 = vsyncadd [#allocation5], 0
      %s27 = sshll.u32 %s1, 4
      %s28 = int_to_ptr.hbm [resolvable:$true] %s27
      %s29 = sshll.u32 [#allocation4], 4
      %s30 = int_to_ptr.vmem [resolvable:$true] %s29
      %32 = dma.hbm_to_vmem [thread:$0]  %s28, 64, %s30, [#allocation5]
    $region9: #{tpu_custom_call.1} parent=1 // pred_fallthru
      _
    // Predicated region
    $region10: #{tpu_custom_call.1} parent=1 // pred_check
      _
    $region11: #{tpu_custom_call.1} parent=1 // pred_check_branch
      %34 = sbr.rel (0) target = $region13
    $region12: #{tpu_custom_call.1} parent=1 // pred_region
      %36 = dma.done [#allocation3], 256
    $region13: #{tpu_custom_call.1} parent=1 // pred_fallthru
      _
    // Predicated region
    $region14: #{tpu_custom_call.1} parent=1 // pred_check
      _
    $region15: #{tpu_custom_call.1} parent=1 // pred_check_branch
      %38 = sbr.rel (0) target = $region17
    $region16: #{tpu_custom_call.1} parent=1 // pred_region
      %40 = dma.done [#allocation5], 64
    $region17: #{tpu_custom_call.1} parent=1 // pred_fallthru
      _
    %v41 = vld [vmem:[#allocation2] sm:$0xff]
    %v42 = vld [vmem:[#allocation2 + $0x8] sm:$0xff]
    %45 = vst [vmem:[#allocation1] ss:$2 sm:$0xff] %v41
    %v46 = vld.sshfl [vmem:[#allocation1] sm:$0xff pattern:$0x75316420]
    %v47 = vld.sshfl [vmem:[#allocation1 + $0x8] sm:$0xff pattern:$0x75316420]
    %s48 = scalar_lea.vmem [#allocation1], 16
    %49 = vst [vmem:[%s48] ss:$2 sm:$0xff] %v42
    %v50 = vld.sshfl [vmem:[#allocation1 + $0x10] sm:$0xff pattern:$0x75316420]
    %v51 = vld.sshfl [vmem:[#allocation1 + $0x18] sm:$0xff pattern:$0x75316420]
    %56 = vst [vmem:[%s2] sm:$0xf] %v46
    %57 = vst [vmem:[%s2 + $0x8] sm:$0xf] %v47
    %58 = vst [vmem:[%s2 + $0x10] sm:$0xf] %v50
    %59 = vst [vmem:[%s2 + $0x18] sm:$0xf] %v51
    %v60 = vld [vmem:[#allocation4] sm:$0xf]
    %s62 = scalar_lea.vmem [#allocation1], 2
    %63 = vst [vmem:[%s62] ss:$4 sm:$0xff] %v60
    %v64 = vld.sshfl [vmem:[#allocation1] sm:$0xff pattern:$0x73625140]
    %v65 = vld.sshfl [vmem:[#allocation1 + $0x8] sm:$0xff pattern:$0x73625140]
    %s66 = scalar_lea.vmem [#allocation1], 34
    %67 = vst [vmem:[%s66] ss:$4 sm:$0xff] %v60
    %v68 = vld.sshfl [vmem:[#allocation1 + $0x20] sm:$0xff pattern:$0x73625140]
    %v69 = vld.sshfl [vmem:[#allocation1 + $0x28] sm:$0xff pattern:$0x73625140]
    %74 = vst [vmem:[%s2] sm:$0x30] %v64
    %75 = vst [vmem:[%s2 + $0x8] sm:$0x30] %v65
    %76 = vst [vmem:[%s2 + $0x10] sm:$0x30] %v68
    %77 = vst [vmem:[%s2 + $0x18] sm:$0x30] %v69
    // Predicated region
    $region18: #{tpu_custom_call.1} parent=1 // pred_check
      _
    $region19: #{tpu_custom_call.1} parent=1 // pred_check_branch
      %79 = sbr.rel (0) target = $region21
    $region20: #{tpu_custom_call.1} parent=1 // pred_region
      _
    $region21: #{tpu_custom_call.1} parent=1 // pred_fallthru
      _
    // Predicated region
    $region22: #{tpu_custom_call.1} parent=1 // pred_check
      _
    $region23: #{tpu_custom_call.1} parent=1 // pred_check_branch
      %81 = sbr.rel (0) target = $region25
    $region24: #{tpu_custom_call.1} parent=1 // pred_region
      _
    $region25: #{tpu_custom_call.1} parent=1 // pred_fallthru
      _
    %82 = vsyncpa [#allocation3], 1
    %83 = vsyncpa [#allocation5], 1

</llo_original>
